<compile_context>
chip_gen: v5e
topology: v5e:2x2
jax: 0.10.0
libtpu: 0.0.40
codegen_flags: <defaults>
</compile_context>

<pallas_src>
import jax
import jax.numpy as jnp
from jax import lax
from jax.experimental import pallas as pl
from jax.experimental.pallas import tpu as pltpu


def _round_up(n, m):
    return ((n + m - 1) // m) * m


def dqn_mlp_kernel(x_ref, w1_ref, b1_ref, w2_ref, b2_ref, w3t_ref, b3_ref, out_ref):
    """Fused 3-layer MLP for one batch tile: MXU matmuls, f32 accumulation.

    Layer 3 is produced transposed (action_dim on sublanes, batch on lanes) so the
    output store is lane-dense.
    """
    # Cast x to the MXU operand dtype inside the kernel (no separate XLA pass over x).
    x = x_ref[...].astype(w1_ref.dtype)

    # Layer 1: [Bt, S] @ [S, H]  (+bias, ReLU in f32)
    h1 = jnp.dot(x, w1_ref[...], preferred_element_type=jnp.float32) + b1_ref[...]
    h1 = jnp.maximum(h1, 0.0).astype(w2_ref.dtype)

    # Layer 2: [Bt, H] @ [H, H]
    h2 = jnp.dot(h1, w2_ref[...], preferred_element_type=jnp.float32) + b2_ref[...]
    h2 = jnp.maximum(h2, 0.0).astype(w3t_ref.dtype)

    # Layer 3, transposed: w3^T [A, H] x h2 [Bt, H] contracted over H -> [A, Bt].
    # (Same "nt" matmul form as attention scores; batch lands on the lane axis so the
    #  store below is dense instead of a 4/128-lane masked vst.)
    out_t = lax.dot_general(
        w3t_ref[...], h2,
        dimension_numbers=(((1,), (1,)), ((), ())),
        preferred_element_type=jnp.float32)
    out_ref[...] = (out_t + b3_ref[...]).astype(out_ref.dtype)


def _choose_batch_tile(batch, block_b):
    """Batch tile: full-array block for tiny batches, else a multiple of 128 lanes
    (batch is the lane axis of the transposed output), with >= 2 grid steps when
    possible so both v7x TensorCores get work."""
    lane = 128
    if batch <= lane:
        return batch                                   # single full-array block
    bt = max(lane, (min(int(block_b), batch) // lane) * lane)
    if pl.cdiv(batch, bt) < 2:                         # v7x megacore: avoid a 1-step grid
        bt = max(lane, _round_up(pl.cdiv(batch, 2), lane))
    return bt


def legacy_dqn_forward(x, params, *, block_b=2048, compute_dtype=jnp.bfloat16):
    """x: [B, state_dim] f32.  params: dict of w1,b1,w2,b2,w3,b3 (weights [in, out])."""
    w1, b1, w2, b2, w3, b3 = (params["w1"], params["b1"], params["w2"],
                              params["b2"], params["w3"], params["b3"])
    B, state_dim = x.shape
    hidden = w1.shape[1]
    action_dim = w3.shape[1]

    bt = _choose_batch_tile(B, block_b)
    grid = (pl.cdiv(B, bt),)

    # Weight MXU operands in compute dtype (x is cast inside the kernel).
    w1c = w1.astype(compute_dtype)
    w2c = w2.astype(compute_dtype)
    w3t = w3.T.astype(compute_dtype)                        # [A, H] for the "nt" matmul
    # Biases stay f32 and are added to the f32 accumulator.
    b1f = b1.reshape(1, hidden).astype(jnp.float32)
    b2f = b2.reshape(1, hidden).astype(jnp.float32)
    b3f = b3.reshape(1, action_dim).T.astype(jnp.float32)   # [A, 1], broadcasts on lanes

    witem = jnp.dtype(compute_dtype).itemsize
    flops = 2 * B * (state_dim * hidden + hidden * hidden + hidden * action_dim)
    bytes_accessed = (
        B * state_dim * 4                                                    # x (f32) in
        + (state_dim * hidden + hidden * hidden + hidden * action_dim) * witem  # weights
        + (2 * hidden + action_dim) * 4                                      # biases
        + B * action_dim * 4                                                 # output
    )

    out_t = pl.pallas_call(
        dqn_mlp_kernel,
        out_shape=jax.ShapeDtypeStruct((action_dim, B), jnp.float32),
        grid=grid,
        in_specs=[
            pl.BlockSpec((bt, state_dim), lambda i: (i, 0)),       # x: one tile per step
            pl.BlockSpec((state_dim, hidden), lambda i: (0, 0)),   # w1: VMEM-resident
            pl.BlockSpec((1, hidden), lambda i: (0, 0)),           # b1: resident
            pl.BlockSpec((hidden, hidden), lambda i: (0, 0)),      # w2: resident
            pl.BlockSpec((1, hidden), lambda i: (0, 0)),           # b2: resident
            pl.BlockSpec((action_dim, hidden), lambda i: (0, 0)),  # w3^T: resident
            pl.BlockSpec((action_dim, 1), lambda i: (0, 0)),       # b3: resident
        ],
        # Transposed output: batch on the lane axis -> dense stores / contiguous DMA.
        out_specs=pl.BlockSpec((action_dim, bt), lambda i: (0, i)),
        compiler_params=pltpu.CompilerParams(
            dimension_semantics=("parallel",),   # megacore split of the batch grid (v7x)
        ),
        cost_estimate=pl.CostEstimate(
            flops=flops, bytes_accessed=bytes_accessed, transcendentals=0),
    )(x, w1c, b1f, w2c, b2f, w3t, b3f)

    # Tiny (A, B) -> (B, A) transpose on the 4-wide output; negligible vs. the x stream.
    return out_t.T


def init_params(key, state_dim, action_dim, hidden=128):
    """Deterministic synthetic init (uniform, roughly matching nn.Linear scaling)."""
    ks = jax.random.split(key, 6)

    def lin(kw, kb, fan_in, fan_out):
        bound = 1.0 / jnp.sqrt(fan_in)
        w = jax.random.uniform(kw, (fan_in, fan_out), jnp.float32, -bound, bound)
        b = jax.random.uniform(kb, (1, fan_out), jnp.float32, -bound, bound)
        return w, b

    w1, b1 = lin(ks[0], ks[1], state_dim, hidden)
    w2, b2 = lin(ks[2], ks[3], hidden, hidden)
    w3, b3 = lin(ks[4], ks[5], hidden, action_dim)
    return {"w1": w1, "b1": b1, "w2": w2, "b2": b2, "w3": w3, "b3": b3}


def reference_forward(x, p):
    h1 = jnp.maximum(x @ p["w1"] + p["b1"], 0.0)
    h2 = jnp.maximum(h1 @ p["w2"] + p["b2"], 0.0)
    return h2 @ p["w3"] + p["b3"]


if __name__ == "__main__":
    key = jax.random.PRNGKey(0)
    k_x, k_p, k_x2, k_x3 = jax.random.split(key, 4)

    state_dim = 16
    action_dim = 4
    hidden = 128

    params = init_params(k_p, state_dim, action_dim, hidden)

    # 1) Small batch, f32 compute path (single full-array block).
    x_small = jax.random.normal(k_x, (8, state_dim), jnp.float32)
    out_f32 = jax.block_until_ready(
        legacy_dqn_forward(x_small, params, compute_dtype=jnp.float32))
    ref_small = reference_forward(x_small, params)
    assert out_f32.shape == (8, action_dim)
    assert jnp.allclose(out_f32, ref_small, atol=2e-2, rtol=2e-2)

    # 2) Ragged batch over a multi-step grid (3 steps, partial last block), bf16 MXU
    #    operands (relaxed tolerance for bf16 operand rounding).
    x_big = jax.random.normal(k_x2, (300, state_dim), jnp.float32)
    out_bf16 = jax.block_until_ready(
        legacy_dqn_forward(x_big, params, block_b=128, compute_dtype=jnp.bfloat16))
    ref_big = reference_forward(x_big, params)
    assert out_bf16.shape == (300, action_dim)
    assert jnp.allclose(out_bf16, ref_big, atol=6e-2, rtol=6e-2)

    # 3) Non-aligned small batch, default tile (single full-array block), bf16.
    x_mid = jax.random.normal(k_x3, (50, state_dim), jnp.float32)
    out_mid = jax.block_until_ready(legacy_dqn_forward(x_mid, params))
    ref_mid = reference_forward(x_mid, params)
    assert out_mid.shape == (50, action_dim)
    assert jnp.allclose(out_mid, ref_mid, atol=6e-2, rtol=6e-2)

    print("KERNEL_OK")
</pallas_src>

<mosaic_0001>
module attributes {stable_mosaic.version = 11 : i64} {
  func.func @dqn_mlp_kernel(%arg0: i32, %arg1: memref<8x16xf32, #tpu.memory_space<vmem>>, %arg2: memref<16x128xf32, #tpu.memory_space<vmem>>, %arg3: memref<1x128xf32, #tpu.memory_space<vmem>>, %arg4: memref<128x128xf32, #tpu.memory_space<vmem>>, %arg5: memref<1x128xf32, #tpu.memory_space<vmem>>, %arg6: memref<4x128xf32, #tpu.memory_space<vmem>>, %arg7: memref<4x1xf32, #tpu.memory_space<vmem>>, %arg8: memref<4x8xf32, #tpu.memory_space<vmem>>) attributes {dimension_semantics = [#tpu.dimension_semantics<parallel>], iteration_bounds = array<i64: 1>, scalar_prefetch = 0 : i64, scratch_operands = 0 : i64, tpu.core_type = #tpu.core_type<tc>, window_params = [{transform_indices = @transform_0, window_bounds = array<i64: 8, 16>}, {pipeline_mode = #tpu.pipeline_mode<synchronous>, transform_indices = @transform_1, window_bounds = array<i64: 16, 128>}, {pipeline_mode = #tpu.pipeline_mode<synchronous>, transform_indices = @transform_2, window_bounds = array<i64: 1, 128>}, {pipeline_mode = #tpu.pipeline_mode<synchronous>, transform_indices = @transform_3, window_bounds = array<i64: 128, 128>}, {pipeline_mode = #tpu.pipeline_mode<synchronous>, transform_indices = @transform_4, window_bounds = array<i64: 1, 128>}, {pipeline_mode = #tpu.pipeline_mode<synchronous>, transform_indices = @transform_5, window_bounds = array<i64: 4, 128>}, {pipeline_mode = #tpu.pipeline_mode<synchronous>, transform_indices = @transform_6, window_bounds = array<i64: 4, 1>}, {transform_indices = @transform_7, window_bounds = array<i64: 4, 8>}]} {
    %c0 = arith.constant 0 : index
    %c0_0 = arith.constant 0 : index
    %0 = vector.load %arg1[%c0, %c0_0] : memref<8x16xf32, #tpu.memory_space<vmem>>, vector<8x16xf32>
    %c0_1 = arith.constant 0 : index
    %c0_2 = arith.constant 0 : index
    %1 = vector.load %arg2[%c0_1, %c0_2] : memref<16x128xf32, #tpu.memory_space<vmem>>, vector<16x128xf32>
    %cst = arith.constant dense<0.000000e+00> : vector<8x128xf32>
    %2 = tpu.matmul %0, %1, %cst {dimension_numbers = #tpu.dot_dimension_numbers<[1], [0], [0], [1], [0, 0, 1, 1], [], []>} : vector<8x16xf32>, vector<16x128xf32>, vector<8x128xf32> -> vector<8x128xf32>
    %c0_3 = arith.constant 0 : index
    %c0_4 = arith.constant 0 : index
    %3 = vector.load %arg3[%c0_3, %c0_4] : memref<1x128xf32, #tpu.memory_space<vmem>>, vector<1x128xf32>
    %4 = vector.broadcast %3 : vector<1x128xf32> to vector<8x128xf32>
    %5 = arith.addf %2, %4 : vector<8x128xf32>
    %cst_5 = arith.constant 0.000000e+00 : f32
    %6 = vector.broadcast %cst_5 : f32 to vector<8x128xf32>
    %7 = arith.maximumf %5, %6 : vector<8x128xf32>
    %c0_6 = arith.constant 0 : index
    %c0_7 = arith.constant 0 : index
    %8 = vector.load %arg4[%c0_6, %c0_7] : memref<128x128xf32, #tpu.memory_space<vmem>>, vector<128x128xf32>
    %cst_8 = arith.constant dense<0.000000e+00> : vector<8x128xf32>
    %9 = tpu.matmul %7, %8, %cst_8 {dimension_numbers = #tpu.dot_dimension_numbers<[1], [0], [0], [1], [0, 0, 1, 1], [], []>} : vector<8x128xf32>, vector<128x128xf32>, vector<8x128xf32> -> vector<8x128xf32>
    %c0_9 = arith.constant 0 : index
    %c0_10 = arith.constant 0 : index
    %10 = vector.load %arg5[%c0_9, %c0_10] : memref<1x128xf32, #tpu.memory_space<vmem>>, vector<1x128xf32>
    %11 = vector.broadcast %10 : vector<1x128xf32> to vector<8x128xf32>
    %12 = arith.addf %9, %11 : vector<8x128xf32>
    %cst_11 = arith.constant 0.000000e+00 : f32
    %13 = vector.broadcast %cst_11 : f32 to vector<8x128xf32>
    %14 = arith.maximumf %12, %13 : vector<8x128xf32>
    %c0_12 = arith.constant 0 : index
    %c0_13 = arith.constant 0 : index
    %15 = vector.load %arg6[%c0_12, %c0_13] : memref<4x128xf32, #tpu.memory_space<vmem>>, vector<4x128xf32>
    %cst_14 = arith.constant dense<0.000000e+00> : vector<4x8xf32>
    %16 = tpu.matmul %15, %14, %cst_14 {dimension_numbers = #tpu.dot_dimension_numbers<[1], [1], [0], [0], [0, 0, 1, 0], [], []>} : vector<4x128xf32>, vector<8x128xf32>, vector<4x8xf32> -> vector<4x8xf32>
    %c0_15 = arith.constant 0 : index
    %c0_16 = arith.constant 0 : index
    %17 = vector.load %arg7[%c0_15, %c0_16] : memref<4x1xf32, #tpu.memory_space<vmem>>, vector<4x1xf32>
    %18 = vector.broadcast %17 : vector<4x1xf32> to vector<4x8xf32>
    %19 = arith.addf %16, %18 : vector<4x8xf32>
    %c0_17 = arith.constant 0 : index
    %c0_18 = arith.constant 0 : index
    %20 = vector.load %arg8[%c0_17, %c0_18] : memref<4x8xf32, #tpu.memory_space<vmem>>, vector<4x8xf32>
    tpu.vector_store %arg8[%c0_17, %c0_18], %19 {strides = array<i32>} : memref<4x8xf32, #tpu.memory_space<vmem>>, vector<4x8xf32>,
    return
  }
  func.func @transform_0(%arg0: i32) -> (i32, i32) {
    %c0_i32 = arith.constant 0 : i32
    %c0_i32_0 = arith.constant 0 : i32
    return %arg0, %c0_i32 : i32, i32
  }
  func.func @transform_1(%arg0: i32) -> (i32, i32) {
    %c0_i32 = arith.constant 0 : i32
    %c0_i32_0 = arith.constant 0 : i32
    %c0_i32_1 = arith.constant 0 : i32
    return %c0_i32, %c0_i32_0 : i32, i32
  }
  func.func @transform_2(%arg0: i32) -> (i32, i32) {
    %c0_i32 = arith.constant 0 : i32
    %c0_i32_0 = arith.constant 0 : i32
    %c0_i32_1 = arith.constant 0 : i32
    return %c0_i32, %c0_i32_0 : i32, i32
  }
  func.func @transform_3(%arg0: i32) -> (i32, i32) {
    %c0_i32 = arith.constant 0 : i32
    %c0_i32_0 = arith.constant 0 : i32
    %c0_i32_1 = arith.constant 0 : i32
    return %c0_i32, %c0_i32_0 : i32, i32
  }
  func.func @transform_4(%arg0: i32) -> (i32, i32) {
    %c0_i32 = arith.constant 0 : i32
    %c0_i32_0 = arith.constant 0 : i32
    %c0_i32_1 = arith.constant 0 : i32
    return %c0_i32, %c0_i32_0 : i32, i32
  }
  func.func @transform_5(%arg0: i32) -> (i32, i32) {
    %c0_i32 = arith.constant 0 : i32
    %c0_i32_0 = arith.constant 0 : i32
    %c0_i32_1 = arith.constant 0 : i32
    return %c0_i32, %c0_i32_0 : i32, i32
  }
  func.func @transform_6(%arg0: i32) -> (i32, i32) {
    %c0_i32 = arith.constant 0 : i32
    %c0_i32_0 = arith.constant 0 : i32
    %c0_i32_1 = arith.constant 0 : i32
    return %c0_i32, %c0_i32_0 : i32, i32
  }
  func.func @transform_7(%arg0: i32) -> (i32, i32) {
    %c0_i32 = arith.constant 0 : i32
    %c0_i32_0 = arith.constant 0 : i32
    return %c0_i32, %arg0 : i32, i32
  }
}

</mosaic_0001>

<llo_original>
// kernel: tpu_custom_call.1
$region0: #{tpu_custom_call.1}
  #allocation0 [shape = 'u32[]', space=smem, size = 0x4, offset = 0x4, fixed_abs, tag = 'smem constant byte address 0x4 - core index']
  #allocation1 [shape = 'u32[72,128]{1,0:T(1,128)}', space=vmem, size = 0x9000, scoped, tag = 'internal scratch']
  %s0 = inlined_call_operand.hbm [shape: f32[8,16], index: 0, kind: input, shape index: {}]
  %s1 = inlined_call_operand.hbm [shape: f32[16,128], index: 1, kind: input, shape index: {}]
  %s2 = inlined_call_operand.vmem [shape: f32[1,128], index: 2, kind: input, shape index: {}]
  %s3 = inlined_call_operand.hbm [shape: f32[128,128], index: 3, kind: input, shape index: {}]
  %s4 = inlined_call_operand.vmem [shape: f32[1,128], index: 4, kind: input, shape index: {}]
  %s5 = inlined_call_operand.vmem [shape: f32[4,128], index: 5, kind: input, shape index: {}]
  %s6 = inlined_call_operand.vmem [shape: f32[4,1], index: 6, kind: input, shape index: {}]
  %s7 = inlined_call_operand.hbm [shape: f32[4,8], index: 7, kind: output, shape index: {}]
  %s8 = sld [smem:[#allocation0]]
  $region50: #{tpu_custom_call.1} parent=0
    _
  %s10 = ssub.s32 1, %s8
  %s11 = scalar_select 0, %s10, %s8
  $region1: #{tpu_custom_call.1} parent=0
    #allocation2 [shape = 'u8[4096]{0}', space=vmem, size = 0x1000, scoped, tag = 'input window, operand 0, single buffered']
    #allocation3 [shape = 's32[1]{0}', space=sflag, size = 0x4, scoped, tag = 'scoped memory for tpu_custom_call.1']
    #allocation4 [shape = 's32[1]{0}', space=sflag, size = 0x4, scoped, tag = 'scoped memory for tpu_custom_call.1']
    #allocation5 [shape = 'u8[8192]{0}', space=vmem, size = 0x2000, scoped, tag = 'input window, operand 1, single buffered']
    #allocation6 [shape = 's32[1]{0}', space=sflag, size = 0x4, scoped, tag = 'scoped memory for tpu_custom_call.1']
    #allocation7 [shape = 'u8[65536]{0}', space=vmem, size = 0x10000, scoped, tag = 'input window, operand 3, single buffered']
    #allocation8 [shape = 'u8[2048]{0}', space=vmem, size = 0x800, scoped, tag = 'output window, operand 0, single buffered']
    %12 = vsyncpa [#allocation3], 0
    %13 = vsyncpa [#allocation6], 0
    %14 = vsyncpa [#allocation4], 0
    // Predicated region
    $region2: #{tpu_custom_call.1} parent=1 // pred_check
      _
    $region3: #{tpu_custom_call.1} parent=1 // pred_check_branch
      %16 = sbr.rel (0) target = $region5
    $region4: #{tpu_custom_call.1} parent=1 // pred_region
      %18 = vsyncadd [#allocation3], 0
      %s20 = sshll.u32 %s0, 4
      %s21 = int_to_ptr.hbm [resolvable:$true] %s20
      %s22 = sshll.u32 [#allocation2], 4
      %s23 = int_to_ptr.vmem [resolvable:$true] %s22
      %25 = dma.hbm_to_vmem [thread:$0]  %s21, 128, %s23, [#allocation3]
    $region5: #{tpu_custom_call.1} parent=1 // pred_fallthru
      _
    // Predicated region
    $region6: #{tpu_custom_call.1} parent=1 // pred_check
      _
    $region7: #{tpu_custom_call.1} parent=1 // pred_check_branch
      %27 = sbr.rel (0) target = $region9
    $region8: #{tpu_custom_call.1} parent=1 // pred_region
      %29 = vsyncadd [#allocation6], 0
      %s30 = sshll.u32 %s1, 4
      %s31 = int_to_ptr.hbm [resolvable:$true] %s30
      %s32 = sshll.u32 [#allocation5], 4
      %s33 = int_to_ptr.vmem [resolvable:$true] %s32
      %38 = dma.hbm_to_vmem [thread:$0]  %s31, 256, %s33, [#allocation6], 128, 128, 8
    $region9: #{tpu_custom_call.1} parent=1 // pred_fallthru
      _
    // Predicated region
    $region10: #{tpu_custom_call.1} parent=1 // pred_check
      _
    $region11: #{tpu_custom_call.1} parent=1 // pred_check_branch
      %40 = sbr.rel (0) target = $region13
    $region12: #{tpu_custom_call.1} parent=1 // pred_region
      _
    $region13: #{tpu_custom_call.1} parent=1 // pred_fallthru
      _
    // Predicated region
    $region14: #{tpu_custom_call.1} parent=1 // pred_check
      _
    $region15: #{tpu_custom_call.1} parent=1 // pred_check_branch
      %42 = sbr.rel (0) target = $region17
    $region16: #{tpu_custom_call.1} parent=1 // pred_region
      %44 = vsyncadd [#allocation6], 0
      %s45 = sshll.u32 %s3, 4
      %s46 = int_to_ptr.hbm [resolvable:$true] %s45
      %s47 = sshll.u32 [#allocation7], 4
      %s48 = int_to_ptr.vmem [resolvable:$true] %s47
      %53 = dma.hbm_to_vmem [thread:$0]  %s46, 2048, %s48, [#allocation6], 128, 128, 8
    $region17: #{tpu_custom_call.1} parent=1 // pred_fallthru
      _
    // Predicated region
    $region18: #{tpu_custom_call.1} parent=1 // pred_check
      _
    $region19: #{tpu_custom_call.1} parent=1 // pred_check_branch
      %55 = sbr.rel (0) target = $region21
    $region20: #{tpu_custom_call.1} parent=1 // pred_region
      _
    $region21: #{tpu_custom_call.1} parent=1 // pred_fallthru
      _
    // Predicated region
    $region22: #{tpu_custom_call.1} parent=1 // pred_check
      _
    $region23: #{tpu_custom_call.1} parent=1 // pred_check_branch
      %57 = sbr.rel (0) target = $region25
    $region24: #{tpu_custom_call.1} parent=1 // pred_region
      _
    $region25: #{tpu_custom_call.1} parent=1 // pred_fallthru
      _
    // Predicated region
    $region26: #{tpu_custom_call.1} parent=1 // pred_check
      _
    $region27: #{tpu_custom_call.1} parent=1 // pred_check_branch
      %59 = sbr.rel (0) target = $region29
    $region28: #{tpu_custom_call.1} parent=1 // pred_region
      _
    $region29: #{tpu_custom_call.1} parent=1 // pred_fallthru
      _
    // Predicated region
    $region30: #{tpu_custom_call.1} parent=1 // pred_check
      _
    $region31: #{tpu_custom_call.1} parent=1 // pred_check_branch
      %61 = sbr.rel (0) target = $region33
    $region32: #{tpu_custom_call.1} parent=1 // pred_region
      %63 = dma.done [#allocation3], 128
    $region33: #{tpu_custom_call.1} parent=1 // pred_fallthru
      _
    // Predicated region
    $region34: #{tpu_custom_call.1} parent=1 // pred_check
      _
    $region35: #{tpu_custom_call.1} parent=1 // pred_check_branch
      %65 = sbr.rel (0) target = $region37
    $region36: #{tpu_custom_call.1} parent=1 // pred_region
      %67 = dma.done [#allocation6], 256
    $region37: #{tpu_custom_call.1} parent=1 // pred_fallthru
      _
    // Predicated region
    $region38: #{tpu_custom_call.1} parent=1 // pred_check
      _
    $region39: #{tpu_custom_call.1} parent=1 // pred_check_branch
      %69 = sbr.rel (0) target = $region41
    $region40: #{tpu_custom_call.1} parent=1 // pred_region
      %71 = dma.done [#allocation6], 2048
    $region41: #{tpu_custom_call.1} parent=1 // pred_fallthru
      _
    %v72 = vld [vmem:[#allocation2] sm:$0xff]
    %v73 = vld [vmem:[#allocation5] sm:$0xff]
    %v74 = vld [vmem:[#allocation5 + $0x8] sm:$0xff]
    %v75 = vld [vmem:[%s2] sm:$0x1]
    %v77 = vperm.slane %v75, 0
    %vm79 = vcmask 130048
    %v81 = vsel %vm79, %v72, 0
    %83 = vmatpush.msra.mxu0 0.0
    %84 = vmatpush.msra.mxu0 0.0
    %85 = vmatpush.msra.mxu0 0.0
    %86 = vmatpush.msra.mxu0 0.0
    %87 = vmatpush.msra.mxu0 0.0
    %88 = vmatpush.msra.mxu0 0.0
    %89 = vmatpush.msra.mxu0 0.0
    %90 = vmatpush.msra.mxu0 0.0
    %91 = vmatpush.msra.mxu0 0.0
    %92 = vmatpush.msra.mxu0 0.0
    %93 = vmatpush.msra.mxu0 0.0
    %94 = vmatpush.msra.mxu0 0.0
    %95 = vmatpush.msra.mxu0 0.0
    %96 = vmatpush.msra.mxu0 0.0
    %97 = vmatpush.msra.mxu0 %v74
    %98 = vmatpush.msra.mxu0 %v73
    %99 = vmatmul.f32.gmra.mxu0 %v81
    %v100 = vpop.f32.mrf.mxu0
    %v101 = vadd.f32 %v77, %v100
    %102 = vdwg.mxu0
    %v103 = vmax.f32 %v101, 0.0
    %v104 = vld [vmem:[#allocation7] sm:$0xff]
    %v105 = vld [vmem:[#allocation7 + $0x8] sm:$0xff]
    %v106 = vld [vmem:[#allocation7 + $0x10] sm:$0xff]
    %v107 = vld [vmem:[#allocation7 + $0x18] sm:$0xff]
    %v108 = vld [vmem:[#allocation7 + $0x20] sm:$0xff]
    %v109 = vld [vmem:[#allocation7 + $0x28] sm:$0xff]
    %v110 = vld [vmem:[#allocation7 + $0x30] sm:$0xff]
    %v111 = vld [vmem:[#allocation7 + $0x38] sm:$0xff]
    %v112 = vld [vmem:[#allocation7 + $0x40] sm:$0xff]
    %v113 = vld [vmem:[#allocation7 + $0x48] sm:$0xff]
    %v114 = vld [vmem:[#allocation7 + $0x50] sm:$0xff]
    %v115 = vld [vmem:[#allocation7 + $0x58] sm:$0xff]
    %v116 = vld [vmem:[#allocation7 + $0x60] sm:$0xff]
    %v117 = vld [vmem:[#allocation7 + $0x68] sm:$0xff]
    %v118 = vld [vmem:[#allocation7 + $0x70] sm:$0xff]
    %v119 = vld [vmem:[#allocation7 + $0x78] sm:$0xff]
    %v120 = vld [vmem:[%s4] sm:$0x1]
    %v122 = vperm.slane %v120, 0
    %124 = vmatpush.msra.mxu0 %v119
    %125 = vmatpush.msra.mxu0 %v118
    %126 = vmatpush.msra.mxu0 %v117
    %127 = vmatpush.msra.mxu0 %v116
    %128 = vmatpush.msra.mxu0 %v115
    %129 = vmatpush.msra.mxu0 %v114
    %130 = vmatpush.msra.mxu0 %v113
    %131 = vmatpush.msra.mxu0 %v112
    %132 = vmatpush.msra.mxu0 %v111
    %133 = vmatpush.msra.mxu0 %v110
    %134 = vmatpush.msra.mxu0 %v109
    %135 = vmatpush.msra.mxu0 %v108
    %136 = vmatpush.msra.mxu0 %v107
    %137 = vmatpush.msra.mxu0 %v106
    %138 = vmatpush.msra.mxu0 %v105
    %139 = vmatpush.msra.mxu0 %v104
    %140 = vmatmul.f32.gmra.mxu0 %v103
    %v141 = vpop.f32.mrf.mxu0
    %v142 = vadd.f32 %v122, %v141
    %143 = vdwg.mxu0
    %v144 = vmax.f32 %v142, 0.0
    %v145 = vld [vmem:[%s5] sm:$0xf]
    %v146 = vld [vmem:[%s6] sm:$0xf]
    %148 = vset.pattern.permute.xlu0 0
    %149 = vperm.xlu0 %148, %v146
    %v150 = vpop.permute.xlu0 %149
    %152 = vmatpush.xpose.msra.mxu0 0.0
    %153 = vmatpush.xpose.msra.mxu0 0.0
    %154 = vmatpush.xpose.msra.mxu0 0.0
    %155 = vmatpush.xpose.msra.mxu0 0.0
    %156 = vmatpush.xpose.msra.mxu0 0.0
    %157 = vmatpush.xpose.msra.mxu0 0.0
    %158 = vmatpush.xpose.msra.mxu0 0.0
    %159 = vmatpush.xpose.msra.mxu0 0.0
    %160 = vmatpush.xpose.msra.mxu0 0.0
    %161 = vmatpush.xpose.msra.mxu0 0.0
    %162 = vmatpush.xpose.msra.mxu0 0.0
    %163 = vmatpush.xpose.msra.mxu0 0.0
    %164 = vmatpush.xpose.msra.mxu0 0.0
    %165 = vmatpush.xpose.msra.mxu0 0.0
    %166 = vmatpush.xpose.msra.mxu0 0.0
    %167 = vmatpush.xpose.msra.mxu0 %v144
    %168 = vmatmul.f32.gmra.mxu0 %v145
    %v169 = vpop.f32.mrf.mxu0
    %v170 = vadd.f32 %v150, %v169
    %171 = vdwg.mxu0
    %vm172 = vcmask 60416
    %173 = vst.msk [vmem:[#allocation8] sm:$0xf] %vm172, %v170
    // Predicated region
    $region42: #{tpu_custom_call.1} parent=1 // pred_check
      _
    $region43: #{tpu_custom_call.1} parent=1 // pred_check_branch
      %175 = sbr.rel (0) target = $region45
    $region44: #{tpu_custom_call.1} parent=1 // pred_region
      %177 = vsyncadd [#allocation4], 0
      %s179 = sshll.u32 [#allocation8], 4
      %s180 = int_to_ptr.vmem [resolvable:$true] %s179
      %s181 = sshll.u32 %s7, 4
      %s182 = int_to_ptr.hbm [resolvable:$true] %s181
      %184 = dma.vmem_to_hbm [thread:$0]  %s180, 64, %s182, [#allocation4]
    $region45: #{tpu_custom_call.1} parent=1 // pred_fallthru
      _
    // Predicated region
    $region46: #{tpu_custom_call.1} parent=1 // pred_check
      _
    $region47: #{tpu_custom_call.1} parent=1 // pred_check_branch
      %186 = sbr.rel (0) target = $region49
    $region48: #{tpu_custom_call.1} parent=1 // pred_region
      %188 = dma.done [#allocation4], 64
    $region49: #{tpu_custom_call.1} parent=1 // pred_fallthru
      _
    %189 = vsyncpa [#allocation3], 1
    %190 = vsyncpa [#allocation6], 1
    %191 = vsyncpa [#allocation4], 1

</llo_original>
